<compile_context>
chip_gen: v6e
topology: v6e:2x2x1
jax: 0.10.0
libtpu: 0.0.40
codegen_flags: <defaults>
</compile_context>

<pallas_src>
import math

import jax
import jax.numpy as jnp
from jax.experimental import pallas as pl
from jax.experimental.pallas import tpu as pltpu


# ---------------------------------------------------------------------------
# Fast path: only the scaled channels are moved; output aliases the input.
# ---------------------------------------------------------------------------
def _pair_scale_kernel(att_ref, x_ref, o_ref):
    # att_ref: SMEM (1,) float32 scalar-prefetch ref.
    # x_ref / o_ref: VMEM [row_tile, S] slab = one scaled channel.
    o_ref[...] = (x_ref[...] * att_ref[0]).astype(o_ref.dtype)


def _fixed_attention_fast(x, attention):
    B, C = x.shape[0], x.shape[1]
    S = math.prod(x.shape[2:])
    G = C // 6

    x2 = x.reshape(B, C * S)
    att = jnp.asarray(attention, dtype=jnp.float32).reshape(1)

    # Keep each block small enough that in+out double-buffering fits easily in
    # scoped VMEM on v5e (16 MiB) / v7x (32 MiB default, 64 MiB physical).
    itemsize = jnp.dtype(x.dtype).itemsize
    max_rows = max(1, (2 * 1024 * 1024) // (S * itemsize))
    if B <= max_rows:
        row_tile = B                              # full dim -> legal block
    else:
        row_tile = max(8, (max_rows // 8) * 8)    # multiple of 8 sublanes

    grid = (pl.cdiv(B, row_tile), G, 2)

    # Lane block = S, so lane-block index (6*g + 3 + k) selects exactly the
    # channel 6*g + 3 + k slab of width S.
    block = pl.BlockSpec(
        (row_tile, S), lambda r, g, k, att_ref: (r, 6 * g + 3 + k)
    )

    out2 = pl.pallas_call(
        _pair_scale_kernel,
        out_shape=jax.ShapeDtypeStruct((B, C * S), x.dtype),
        grid_spec=pltpu.PrefetchScalarGridSpec(
            num_scalar_prefetch=1,
            grid=grid,
            in_specs=[block],
            out_specs=block,
        ),
        compiler_params=pltpu.CompilerParams(
            dimension_semantics=("parallel", "parallel", "parallel")
        ),
        # Alias x into the output: untouched channels pass through with zero
        # traffic (caller should donate x, otherwise XLA inserts a copy).
        input_output_aliases={1: 0},
    )(att, x2)

    return out2.reshape(x.shape)


# ---------------------------------------------------------------------------
# Fallback path: arbitrary shapes (spatial size not a multiple of 128, C < 6).
# Whole-block multiply by a precomputed per-channel scale vector.
# ---------------------------------------------------------------------------
def _scale_vector_kernel(scale_ref, x_ref, o_ref):
    # scale_ref: VMEM [C, 1] float32; x_ref / o_ref: VMEM [1, C, S].
    o_ref[...] = (x_ref[...] * scale_ref[...][None, :, :]).astype(o_ref.dtype)


def _fixed_attention_fallback(x, attention):
    B, C = x.shape[0], x.shape[1]
    S = math.prod(x.shape[2:])
    G = C // 6

    x3 = x.reshape(B, C, S)
    c = jnp.arange(C)
    mask = (c < 6 * G) & ((c % 6 == 3) | (c % 6 == 4))
    scale = jnp.where(mask, jnp.asarray(attention, jnp.float32), 1.0)
    scale = scale.reshape(C, 1)

    out3 = pl.pallas_call(
        _scale_vector_kernel,
        out_shape=jax.ShapeDtypeStruct((B, C, S), x.dtype),
        grid=(B,),
        in_specs=[
            pl.BlockSpec((C, 1), lambda b: (0, 0)),
            pl.BlockSpec((1, C, S), lambda b: (b, 0, 0)),
        ],
        out_specs=pl.BlockSpec((1, C, S), lambda b: (b, 0, 0)),
        compiler_params=pltpu.CompilerParams(dimension_semantics=("parallel",)),
    )(scale, x3)

    return out3.reshape(x.shape)


def fixed_attention(x, attention):
    """Pallas TPU implementation of FixedAttention.forward."""
    C = x.shape[1]
    S = math.prod(x.shape[2:])
    if C >= 6 and S % 128 == 0:
        return _fixed_attention_fast(x, attention)
    return _fixed_attention_fallback(x, attention)


def fixed_attention_ref(x, attention):
    """Pure-JAX reference mirroring the PyTorch double loop."""
    C = x.shape[1]
    G = C // 6
    c = jnp.arange(C)
    mask = (c < 6 * G) & ((c % 6 == 3) | (c % 6 == 4))
    scale = jnp.where(mask, attention, 1.0).astype(x.dtype)
    return x * scale.reshape((1, C) + (1,) * (x.ndim - 2))


if __name__ == "__main__":
    key = jax.random.PRNGKey(0)
    B, C, H, W = 2, 12, 16, 16
    x = jax.random.normal(key, (B, C, H, W), dtype=jnp.float32)
    attention = 0.5

    # Compute the reference first: x's buffer is donated to the kernel below.
    expected = jax.block_until_ready(fixed_attention_ref(x, attention))

    fa = jax.jit(fixed_attention, donate_argnums=0)
    out = jax.block_until_ready(fa(x, attention))

    assert out.shape == (B, C, H, W) and out.dtype == jnp.float32
    assert jnp.allclose(out, expected, atol=1e-6, rtol=1e-6), "mismatch vs reference"

    print("KERNEL_OK")
</pallas_src>

<mosaic_0001>
module attributes {stable_mosaic.version = 11 : i64} {
  func.func @_pair_scale_kernel(%arg0: i32, %arg1: i32, %arg2: i32, %arg3: memref<1xf32, #tpu.memory_space<smem>>, %arg4: memref<2x256xf32, #tpu.memory_space<vmem>>, %arg5: memref<2x256xf32, #tpu.memory_space<vmem>>) attributes {dimension_semantics = [#tpu.dimension_semantics<parallel>, #tpu.dimension_semantics<parallel>, #tpu.dimension_semantics<parallel>], iteration_bounds = array<i64: 1, 2, 2>, scalar_prefetch = 1 : i64, scratch_operands = 0 : i64, tpu.core_type = #tpu.core_type<tc>, window_params = [{transform_indices = @transform_0, window_bounds = array<i64: 2, 256>}, {transform_indices = @transform_1, window_bounds = array<i64: 2, 256>}]} {
    %c0 = arith.constant 0 : index
    %c0_0 = arith.constant 0 : index
    %0 = vector.load %arg4[%c0, %c0_0] : memref<2x256xf32, #tpu.memory_space<vmem>>, vector<2x256xf32>
    %c0_1 = arith.constant 0 : index
    %1 = memref.load %arg3[%c0_1] : memref<1xf32, #tpu.memory_space<smem>>
    %2 = vector.broadcast %1 : f32 to vector<2x256xf32>
    %3 = arith.mulf %0, %2 : vector<2x256xf32>
    %c0_2 = arith.constant 0 : index
    %c0_3 = arith.constant 0 : index
    %4 = vector.load %arg5[%c0_2, %c0_3] : memref<2x256xf32, #tpu.memory_space<vmem>>, vector<2x256xf32>
    tpu.vector_store %arg5[%c0_2, %c0_3], %3 {strides = array<i32>} : memref<2x256xf32, #tpu.memory_space<vmem>>, vector<2x256xf32>,
    return
  }
  func.func @transform_0(%arg0: i32, %arg1: i32, %arg2: i32, %arg3: memref<1xf32, #tpu.memory_space<smem>>) -> (i32, i32) {
    %c6_i32 = arith.constant 6 : i32
    %0 = arith.muli %c6_i32, %arg1 : i32
    %c3_i32 = arith.constant 3 : i32
    %1 = arith.addi %0, %c3_i32 : i32
    %2 = arith.addi %1, %arg2 : i32
    %c0_i32 = arith.constant 0 : i32
    return %arg0, %2 : i32, i32
  }
  func.func @transform_1(%arg0: i32, %arg1: i32, %arg2: i32, %arg3: memref<1xf32, #tpu.memory_space<smem>>) -> (i32, i32) {
    %c6_i32 = arith.constant 6 : i32
    %0 = arith.muli %c6_i32, %arg1 : i32
    %c3_i32 = arith.constant 3 : i32
    %1 = arith.addi %0, %c3_i32 : i32
    %2 = arith.addi %1, %arg2 : i32
    %c0_i32 = arith.constant 0 : i32
    return %arg0, %2 : i32, i32
  }
}

</mosaic_0001>

<llo_original>
// kernel: fixed_attention.1
$region0: #{fixed_attention.1}
  #allocation0 [shape = 'u32[]', space=smem, size = 0x4, offset = 0x4, fixed_abs, tag = 'smem constant byte address 0x4 - core index']
  #allocation1 [shape = 'u32[144,128]{1,0:T(1,128)}', space=vmem, size = 0x12000, scoped, tag = 'internal scratch']
  #allocation2 [shape = 's32[1]{0}', space=sflag, size = 0x4, scoped, tag = 'scoped memory for fixed_attention.1']
  #allocation3 [shape = 'f32[1]{0:T(128)S(6)}', space=smem, size = 0x200, scoped, tag = 'prefetched SMEM operand 0']
  %s0 = inlined_call_operand.<no memory space> [shape: f32[1], index: 0, kind: input, shape index: {}]
  %s1 = inlined_call_operand.vmem [shape: f32[2,3072], index: 1, kind: input, shape index: {}, may-alias: {1,2}]
  %s2 = inlined_call_operand.vmem [shape: f32[2,3072], index: 2, kind: output, shape index: {}, may-alias: {1,2}]
  %s3 = sld [smem:[#allocation0]]
  $region37: #{fixed_attention.1} parent=0
    _
  %s5 = ssub.s32 1, %s3
  %s6 = scalar_select 0, %s5, %s3
  %7 = sst [smem:[#allocation3]] %s0
  loop: start=0, step=1, limit=6
  $region2: #{fixed_attention.1} parent=0 // loop_pre_header
    _
  $region3: #{fixed_attention.1} parent=0 // loop_header
    %s9 = sphi 0, %s13
    %p10 = scmp.ge.s32.totalorder %s9, 6
    %s16 = sphi 0, %s35
    %s17 = sphi 0, %s31
    %s18 = sphi 0, %s27
    %s19 = sphi 0, %s16
    %s20 = sphi 0, %s17
    %s21 = sphi 0, %s18
    %s22 = sphi 0, %s19
    %s23 = sphi 0, %s20
    %s24 = sphi 0, %s21
    %s46 = sphi 0, %s48
    %s49 = sphi 0, %s46
    %s50 = sphi 0, %s49
    %s66 = sphi 0, %s50
    %s80 = sphi 0, %s82
    %s83 = sphi 0, %s80
    %s84 = sphi 0, %s83
    %s100 = sphi 0, %s84
  $region4: #{fixed_attention.1} parent=0 // loop_header_branch
    %12 = sbr.rel (%p10) target = $region8
  $region5: #{fixed_attention.1} parent=0 // loop_body
    %s14 = ssub.s32 %s9, 1
    %s15 = ssub.s32 %s9, 2
    %s25 = sadd.s32 1, %s18
    %p26 = scmp.ge.s32.totalorder %s25, 2
    %s27 = scalar_select %p26, 0, %s25
    %s28 = sadd.s32 1, %s17
    %s29 = scalar_select %p26, %s28, %s17
    %p30 = scmp.ge.s32.totalorder %s29, 2
    %s31 = scalar_select %p30, 0, %s29
    %s32 = sadd.s32 1, %s16
    %s33 = scalar_select %p30, %s32, %s16
    %p34 = scmp.ge.s32.totalorder %s33, 1
    %s35 = scalar_select %p34, 0, %s33
    %s36 = smul.u32 %s17, 6
    %s37 = sadd.s32 %s36, 3
    %s38 = sadd.s32 %s37, %s18
    %s39 = smul.u32 %s31, 6
    %s40 = sadd.s32 %s39, 3
    %s41 = sadd.s32 %s40, %s27
    %s42 = ssub.s32 %s16, %s35
    %s43 = ssub.s32 %s38, %s41
    %s44 = sor.u32 %s42, %s43
    %p45 = scmp.eq.s32.totalorder %s44, 0
    %s47 = sadd.s32 %s46, 1
    %s48 = scalar_select %p45, %s46, %s47
    %p51 = pneg %p45
    %p52 = scmp.eq.s32.totalorder %s9, 3
    %p53 = por %p51, %p52
    %p54 = scmp.ne.s32.totalorder %s46, %s49
    %p55 = scmp.eq.s32.totalorder %s9, 0
    %p56 = por %p54, %p55
    %p57 = scmp.ne.s32.totalorder %s46, %s49
    %p58 = scmp.eq.s32.totalorder %s14, 3
    %p59 = por %p57, %p58
    %p60 = scmp.ne.s32.totalorder %s49, %s50
    %p61 = scmp.eq.s32.totalorder %s14, 0
    %p62 = por %p60, %p61
    %p63 = scmp.ne.s32.totalorder %s49, %s50
    %p64 = scmp.eq.s32.totalorder %s15, 3
    %p65 = por %p63, %p64
    %p67 = scmp.ne.s32.totalorder %s50, %s66
    %p68 = scmp.eq.s32.totalorder %s15, 0
    %p69 = por %p67, %p68
    %s70 = smul.u32 %s17, 6
    %s71 = sadd.s32 %s70, 3
    %s72 = sadd.s32 %s71, %s18
    %s73 = smul.u32 %s31, 6
    %s74 = sadd.s32 %s73, 3
    %s75 = sadd.s32 %s74, %s27
    %s76 = ssub.s32 %s16, %s35
    %s77 = ssub.s32 %s72, %s75
    %s78 = sor.u32 %s76, %s77
    %p79 = scmp.eq.s32.totalorder %s78, 0
    %s81 = sadd.s32 %s80, 1
    %s82 = scalar_select %p79, %s80, %s81
    %p85 = pneg %p79
    %p86 = scmp.eq.s32.totalorder %s9, 3
    %p87 = por %p85, %p86
    %p88 = scmp.ne.s32.totalorder %s80, %s83
    %p89 = scmp.eq.s32.totalorder %s9, 0
    %p90 = por %p88, %p89
    %p91 = scmp.ne.s32.totalorder %s80, %s83
    %p92 = scmp.eq.s32.totalorder %s14, 3
    %p93 = por %p91, %p92
    %p94 = scmp.ne.s32.totalorder %s83, %s84
    %p95 = scmp.eq.s32.totalorder %s14, 0
    %p96 = por %p94, %p95
    %p97 = scmp.ne.s32.totalorder %s83, %s84
    %p98 = scmp.eq.s32.totalorder %s15, 3
    %p99 = por %p97, %p98
    %p101 = scmp.ne.s32.totalorder %s84, %s100
    %p102 = scmp.eq.s32.totalorder %s15, 0
    %p103 = por %p101, %p102
    %p104 = scmp.le.s32.totalorder 1, %s9
    %p105 = scmp.lt.s32.totalorder %s9, 5
    %p106 = pnand %p104, %p105
    %p107 = pneg %p106
    // Predicated region
    $region9: #{fixed_attention.1} parent=5 // pred_check
      _
    $region10: #{fixed_attention.1} parent=5 // pred_check_branch
      %109 = sbr.rel (%p106) target = $region12
    $region11: #{fixed_attention.1} parent=5 // pred_region
      %s110 = ssub.s32 %s9, 1
    $region12: #{fixed_attention.1} parent=5 // pred_fallthru
      _
    %p111 = scmp.lt.s32.totalorder %s9, 4
    // Predicated region
    $region13: #{fixed_attention.1} parent=5 // pred_check
      %p112 = pneg %p111
    $region14: #{fixed_attention.1} parent=5 // pred_check_branch
      %114 = sbr.rel (%p112) target = $region16
    $region15: #{fixed_attention.1} parent=5 // pred_region
      // Predicated region
      $region17: #{fixed_attention.1} parent=15 // pred_check
        %p115 = pneg %p56
      $region18: #{fixed_attention.1} parent=15 // pred_check_branch
        %117 = sbr.rel (%p115) target = $region20
      $region19: #{fixed_attention.1} parent=15 // pred_region
        %s118 = smul.u32 %s17, 6
        %s119 = sadd.s32 %s118, 3
        %s120 = sadd.s32 %s119, %s18
        %s121 = smul.u32 2, %s120
        %p122 = scmp.lt.s32.totalorder %s16, 0
        %s123 = scalar_select %p122, %s16, 0
        %p124 = scmp.lt.s32.totalorder %s121, 23
        %s125 = scalar_select %p124, %s121, 23
        %s126 = smul.addr %s123, 24
        %s127 = sadd.s32 %s125, %s126
        %s128 = smul.addr %s127, 2
        %s129 = scalar_lea.vmem %s1, %s128
        %s130 = smul.u32 %s17, 6
        %s131 = sadd.s32 %s130, 3
        %s132 = sadd.s32 %s131, %s18
        %s133 = smul.u32 2, %s132
      $region20: #{fixed_attention.1} parent=15 // pred_fallthru
        _
    $region16: #{fixed_attention.1} parent=5 // pred_fallthru
      _
    %p134 = scmp.le.s32.totalorder 1, %s9
    %p135 = scmp.lt.s32.totalorder %s9, 5
    %p136 = pnand %p134, %p135
    %p137 = pneg %p136
    // Predicated region
    $region21: #{fixed_attention.1} parent=5 // pred_check
      _
    $region22: #{fixed_attention.1} parent=5 // pred_check_branch
      %139 = sbr.rel (%p136) target = $region24
    $region23: #{fixed_attention.1} parent=5 // pred_region
      %s140 = ssub.s32 %s9, 1
      %s141 = smul.u32 %s20, 6
      %s142 = sadd.s32 %s141, 3
      %s143 = sadd.s32 %s142, %s21
      %s144 = smul.u32 2, %s143
      %p145 = scmp.lt.s32.totalorder %s19, 0
      %s146 = scalar_select %p145, %s19, 0
      %p147 = scmp.lt.s32.totalorder %s144, 23
      %s148 = scalar_select %p147, %s144, 23
      %s149 = smul.addr %s146, 24
      %s150 = sadd.s32 %s148, %s149
      %s151 = smul.addr %s150, 2
      %s152 = scalar_lea.vmem %s1, %s151
      %p153 = pneg %p62
      %p154 = pneg %p59
      %p155 = pneg %p96
      %p156 = pneg %p93
      %s157 = smul.u32 %s20, 6
      %s158 = sadd.s32 %s157, 3
      %s159 = sadd.s32 %s158, %s21
      %s160 = smul.u32 2, %s159
      %p161 = scmp.lt.s32.totalorder %s19, 0
      %s162 = scalar_select %p161, %s19, 0
      %p163 = scmp.lt.s32.totalorder %s160, 23
      %s164 = scalar_select %p163, %s160, 23
      %s165 = smul.addr %s162, 24
      %s166 = sadd.s32 %s164, %s165
      %s167 = smul.addr %s166, 2
      %s168 = scalar_lea.vmem %s2, %s167
      %s169 = smul.u32 %s20, 6
      %s170 = sadd.s32 %s169, 3
      %s171 = sadd.s32 %s170, %s21
      %s172 = smul.u32 2, %s171
      %p173 = scmp.lt.s32.totalorder %s19, 0
      %s174 = scalar_select %p173, %s19, 0
      %p175 = scmp.lt.s32.totalorder %s172, 23
      %s176 = scalar_select %p175, %s172, 23
      %s177 = smul.addr %s174, 24
      %s178 = sadd.s32 %s176, %s177
      %s179 = smul.addr %s178, 2
      %s180 = scalar_lea.vmem %s1, %s179
      %s181 = smul.u32 %s20, 6
      %s182 = sadd.s32 %s181, 3
      %s183 = sadd.s32 %s182, %s21
      %s184 = smul.u32 2, %s183
      %s185 = smul.u32 %s20, 6
      %s186 = sadd.s32 %s185, 3
      %s187 = sadd.s32 %s186, %s21
      %s188 = smul.u32 2, %s187
      %p189 = scmp.lt.s32.totalorder %s19, 0
      %s190 = scalar_select %p189, %s19, 0
      %p191 = scmp.lt.s32.totalorder %s188, 23
      %s192 = scalar_select %p191, %s188, 23
      %s193 = smul.addr %s190, 24
      %s194 = sadd.s32 %s192, %s193
      %s195 = smul.addr %s194, 2
      %s196 = scalar_lea.vmem %s2, %s195
      %s197 = smul.u32 %s20, 6
      %s198 = sadd.s32 %s197, 3
      %s199 = sadd.s32 %s198, %s21
      %s200 = smul.u32 2, %s199
      %v201 = vld [vmem:[%s180] sm:$0xf]
      %s202 = sld [smem:[#allocation3]]
      %v203 = vstv %s202
      %v204 = vmul.f32 %v201, %v203
      %205 = vst [vmem:[%s196] sm:$0xf] %v204
      %s206 = smul.u32 %s20, 6
      %s207 = sadd.s32 %s206, 3
      %s208 = sadd.s32 %s207, %s21
      %s209 = smul.u32 2, %s208
      %p210 = scmp.lt.s32.totalorder %s19, 0
      %s211 = scalar_select %p210, %s19, 0
      %p212 = scmp.lt.s32.totalorder %s209, 23
      %s213 = scalar_select %p212, %s209, 23
      %s214 = smul.addr %s211, 24
      %s215 = sadd.s32 %s213, %s214
      %s216 = smul.addr %s215, 2
      %s217 = scalar_lea.vmem %s2, %s216
      // Predicated region
      $region25: #{fixed_attention.1} parent=23 // pred_check
        %p218 = pneg %p93
      $region26: #{fixed_attention.1} parent=23 // pred_check_branch
        %220 = sbr.rel (%p218) target = $region28
      $region27: #{fixed_attention.1} parent=23 // pred_region
        %s221 = smul.u32 %s20, 6
        %s222 = sadd.s32 %s221, 3
        %s223 = sadd.s32 %s222, %s21
        %s224 = smul.u32 2, %s223
      $region28: #{fixed_attention.1} parent=23 // pred_fallthru
        _
    $region24: #{fixed_attention.1} parent=5 // pred_fallthru
      _
    %p225 = scmp.le.s32.totalorder 2, %s9
    // Predicated region
    $region29: #{fixed_attention.1} parent=5 // pred_check
      %p226 = pneg %p225
    $region30: #{fixed_attention.1} parent=5 // pred_check_branch
      %228 = sbr.rel (%p226) target = $region32
    $region31: #{fixed_attention.1} parent=5 // pred_region
      %s229 = ssub.s32 %s9, 2
      // Predicated region
      $region33: #{fixed_attention.1} parent=31 // pred_check
        %p230 = pneg %p99
      $region34: #{fixed_attention.1} parent=31 // pred_check_branch
        %232 = sbr.rel (%p230) target = $region36
      $region35: #{fixed_attention.1} parent=31 // pred_region
        %s233 = smul.u32 %s23, 6
        %s234 = sadd.s32 %s233, 3
        %s235 = sadd.s32 %s234, %s24
        %s236 = smul.u32 2, %s235
        %p237 = scmp.lt.s32.totalorder %s22, 0
        %s238 = scalar_select %p237, %s22, 0
        %p239 = scmp.lt.s32.totalorder %s236, 23
        %s240 = scalar_select %p239, %s236, 23
        %s241 = smul.addr %s238, 24
        %s242 = sadd.s32 %s240, %s241
        %s243 = smul.addr %s242, 2
        %s244 = scalar_lea.vmem %s2, %s243
      $region36: #{fixed_attention.1} parent=31 // pred_fallthru
        _
    $region32: #{fixed_attention.1} parent=5 // pred_fallthru
      _
  $region6: #{fixed_attention.1} parent=0 // loop_footer
    %s13 = sadd.s32 1, %s9
  $region7: #{fixed_attention.1} parent=0 // loop_footer_branch
    %8 = sbr.rel target = $region3
  $region8: #{fixed_attention.1} parent=0 // loop_exit
    _

</llo_original>
